<compile_context>
chip_gen: v5e
topology: v5e:2x2
jax: 0.10.0
libtpu: 0.0.40
codegen_flags: <defaults>
</compile_context>

<pallas_src>
import jax
import jax.numpy as jnp
from jax.experimental import pallas as pl
from jax.experimental.pallas import tpu as pltpu

_LANE = 128        # vreg lane width (pad output/hidden dims to this for dense stores)
_SUBLANE = 8       # f32 sublane width (batch-tile granularity)
_NEG_BIG = -1e30   # bias fill for padded class columns -> exp underflows to exactly 0


def _round_up(v, m):
    return (v + m - 1) // m * m


def _mlp_softmax_kernel(x_ref, w1_ref, b1_ref, w2_ref, b2_ref, w3_ref, b3_ref, o_ref):
    """Fused 3-layer MLP + softmax over one lane-dense batch tile.

    Weights are bf16 (MXU-native); accumulation, bias add, ReLU and softmax are f32.
    Padded logit columns carry a -1e30 bias, so exp() underflows to exactly 0 and the
    real class columns still sum to 1.
    """
    x = x_ref[...]                                    # bf16 [tb, F]

    # Layer 1: Linear + ReLU (bf16 MXU inputs, f32 accumulation)
    h1 = jnp.dot(x, w1_ref[...], preferred_element_type=jnp.float32) + b1_ref[...]
    h1 = jnp.maximum(h1, 0.0)

    # Layer 2: Linear + ReLU
    h2 = jnp.dot(h1.astype(w2_ref.dtype), w2_ref[...],
                 preferred_element_type=jnp.float32) + b2_ref[...]
    h2 = jnp.maximum(h2, 0.0)

    # Layer 3: Linear (logits; padded columns forced to -1e30 via the bias)
    logits = jnp.dot(h2.astype(w3_ref.dtype), w3_ref[...],
                     preferred_element_type=jnp.float32) + b3_ref[...]

    # Softmax over the class (last) axis, all in f32.
    m = jnp.max(logits, axis=-1, keepdims=True)
    e = jnp.exp(logits - m)
    denom = jnp.sum(e, axis=-1, keepdims=True)
    # Exact divide: one value per row, costs nothing, rows sum to 1 to f32 precision.
    o_ref[...] = (e / denom).astype(o_ref.dtype)


def prepare_params(params):
    """Pad + cast the weights ONCE (hoisted out of the per-call forward path).

    Weights -> bf16, zero-padded on hidden/class dims to 128-lane multiples.
    Biases  -> f32, padded to match; b3's padded class columns get -1e30 so softmax
    assigns them exactly zero probability.  The feature dim F is left unpadded.
    """
    w1, b1 = params["w1"], params["b1"]
    w2, b2 = params["w2"], params["b2"]
    w3, b3 = params["w3"], params["b3"]

    F, H2 = w1.shape
    H = w2.shape[1]
    C = w3.shape[1]
    H2p, Hp, Cp = (_round_up(d, _LANE) for d in (H2, H, C))

    bf16 = jnp.bfloat16
    w1p = jnp.pad(w1, ((0, 0), (0, H2p - H2))).astype(bf16)        # [F,   H2p]
    w2p = jnp.pad(w2, ((0, H2p - H2), (0, Hp - H))).astype(bf16)   # [H2p, Hp ]
    w3p = jnp.pad(w3, ((0, Hp - H), (0, Cp - C))).astype(bf16)     # [Hp,  Cp ]
    b1p = jnp.pad(b1, ((0, 0), (0, H2p - H2))).astype(jnp.float32)
    b2p = jnp.pad(b2, ((0, 0), (0, Hp - H))).astype(jnp.float32)
    b3p = jnp.pad(b3, ((0, 0), (0, Cp - C)),
                  constant_values=_NEG_BIG).astype(jnp.float32)

    return {"w1": w1p, "b1": b1p, "w2": w2p, "b2": b2p, "w3": w3p, "b3": b3p,
            "num_classes": int(C)}


def preceptron_forward(x, prepared, *, tile_b=512):
    """x: [B, F] float32.  `prepared` comes from prepare_params() (padded bf16 weights)."""
    w1, b1 = prepared["w1"], prepared["b1"]
    w2, b2 = prepared["w2"], prepared["b2"]
    w3, b3 = prepared["w3"], prepared["b3"]
    C = prepared["num_classes"]

    B, F = x.shape
    assert w1.shape[0] == F
    H2p, Hp, Cp = w1.shape[1], w2.shape[1], w3.shape[1]

    # One big batch tile when possible: per-grid-step overhead (~0.35us) dominates at
    # these sizes, and tb >= 256 keeps the 256-wide MXU fed on v6e/v7x.
    # (On v7x, pick tile_b so the number of tiles is a multiple of 2 for both TCs.)
    tb = min(_round_up(tile_b, _SUBLANE), _round_up(B, _SUBLANE))
    Bp = _round_up(B, tb)
    grid_b = Bp // tb

    # Only x is padded per call (batch axis only; F stays unpadded since the block's
    # last dim equals the full array dim), and cast to bf16 for the MXU.
    xp = jnp.pad(x, ((0, Bp - B), (0, 0))).astype(jnp.bfloat16)

    # Weights/biases stay VMEM-resident across batch tiles (constant block index);
    # only the x / out tiles stream through the auto-pipeline.
    resident = lambda shape: pl.BlockSpec(shape, lambda i: (0, 0))

    flops = 2 * Bp * (F * H2p + H2p * Hp + Hp * Cp)
    transcendentals = Bp * Cp                                  # exp() in the softmax
    bytes_accessed = (
        2 * Bp * F                                             # x (bf16)
        + 2 * (F * H2p + H2p * Hp + Hp * Cp)                   # weights (bf16)
        + 4 * (H2p + Hp + Cp)                                  # biases (f32)
        + 4 * Bp * Cp                                          # output (f32)
    )

    # Explicit VMEM budget (don't rely on the default scoped limit, esp. v5e's 16 MiB):
    # 2x for double-buffered pipeline stages + f32 intermediates + generous slack.
    weights_b = 2 * (F * H2p + H2p * Hp + Hp * Cp) + 4 * (H2p + Hp + Cp)
    io_b = 2 * tb * F + 4 * tb * Cp
    interm_b = 4 * tb * (H2p + Hp + 2 * Cp)
    vmem_limit = int(min(100 * 1024 * 1024,
                         2 * (weights_b + io_b) + 2 * interm_b + (16 << 20)))

    out_p = pl.pallas_call(
        _mlp_softmax_kernel,
        out_shape=jax.ShapeDtypeStruct((Bp, Cp), jnp.float32),
        grid=(grid_b,),
        in_specs=[
            pl.BlockSpec((tb, F), lambda i: (i, 0)),   # streaming batch tile of x
            resident(w1.shape), resident(b1.shape),
            resident(w2.shape), resident(b2.shape),
            resident(w3.shape), resident(b3.shape),
        ],
        out_specs=pl.BlockSpec((tb, Cp), lambda i: (i, 0)),
        compiler_params=pltpu.CompilerParams(
            dimension_semantics=("parallel",),   # shard batch tiles across TCs on v7x
            vmem_limit_bytes=vmem_limit,
        ),
        cost_estimate=pl.CostEstimate(
            flops=int(flops),
            transcendentals=int(transcendentals),
            bytes_accessed=int(bytes_accessed),
        ),
    )(xp, w1, b1, w2, b2, w3, b3)

    # Strip batch / class padding.
    return out_p[:B, :C]


def init_params(key, feature_size, num_classes, hidden_size):
    """Deterministic synthetic init (PyTorch Linear-like uniform ranges)."""
    h2 = hidden_size // 2
    ks = jax.random.split(key, 6)

    def lin(kw, kb, fan_in, fan_out):
        bound = 1.0 / (fan_in ** 0.5)
        # Stored pre-transposed: [in, out]
        w = jax.random.uniform(kw, (fan_in, fan_out), jnp.float32, -bound, bound)
        b = jax.random.uniform(kb, (1, fan_out), jnp.float32, -bound, bound)
        return w, b

    w1, b1 = lin(ks[0], ks[1], feature_size, h2)
    w2, b2 = lin(ks[2], ks[3], h2, hidden_size)
    w3, b3 = lin(ks[4], ks[5], hidden_size, num_classes)
    return {"w1": w1, "b1": b1, "w2": w2, "b2": b2, "w3": w3, "b3": b3}


def reference_forward_f32(x, p):
    """Full-f32 reference (matches the PyTorch module semantics)."""
    h1 = jnp.maximum(x @ p["w1"] + p["b1"], 0.0)
    h2 = jnp.maximum(h1 @ p["w2"] + p["b2"], 0.0)
    logits = h2 @ p["w3"] + p["b3"]
    return jax.nn.softmax(logits, axis=1)


def reference_forward_bf16(x, p):
    """Same numerics as the kernel: bf16 matmul inputs, f32 accumulation + softmax."""
    bf = jnp.bfloat16

    def dot(a, w):
        return jnp.dot(a.astype(bf), w.astype(bf), preferred_element_type=jnp.float32)

    h1 = jnp.maximum(dot(x, p["w1"]) + p["b1"], 0.0)
    h2 = jnp.maximum(dot(h1, p["w2"]) + p["b2"], 0.0)
    logits = dot(h2, p["w3"]) + p["b3"]
    return jax.nn.softmax(logits, axis=1)


if __name__ == "__main__":
    feature_size, num_classes, hidden_size = 32, 10, 32
    batch = 256

    key = jax.random.PRNGKey(0)
    kx, kp = jax.random.split(key)
    x = jax.random.normal(kx, (batch, feature_size), dtype=jnp.float32)
    params = init_params(kp, feature_size, num_classes, hidden_size)

    # Weight padding / bf16 cast done once, outside the per-call forward path.
    prepared = prepare_params(params)

    forward = jax.jit(lambda xx: preceptron_forward(xx, prepared))
    out = jax.block_until_ready(forward(x))
    assert out.shape == (batch, num_classes)

    # Exact-divide softmax: rows sum to 1 to f32 precision.
    assert jnp.allclose(jnp.sum(out, axis=1), 1.0, atol=1e-5)

    # Numerics-matched reference (bf16 matmul inputs, everything else f32).
    ref_bf16 = reference_forward_bf16(x, params)
    assert jnp.allclose(out, ref_bf16, atol=2e-3, rtol=2e-3)

    # Coarse sanity check against the full-f32 PyTorch-equivalent reference
    # (difference comes only from bf16 weight/activation rounding).
    ref_f32 = reference_forward_f32(x, params)
    assert jnp.allclose(out, ref_f32, atol=5e-2)

    # Also exercise the multi-tile streaming path (2 batch tiles of 128).
    out_tiled = jax.block_until_ready(preceptron_forward(x, prepared, tile_b=128))
    assert jnp.allclose(out_tiled, ref_bf16, atol=2e-3, rtol=2e-3)

    print("KERNEL_OK")
</pallas_src>

<mosaic_0001>
module attributes {stable_mosaic.version = 11 : i64} {
  func.func @_mlp_softmax_kernel(%arg0: i32, %arg1: memref<256x32xbf16, #tpu.memory_space<vmem>>, %arg2: memref<32x128xbf16, #tpu.memory_space<vmem>>, %arg3: memref<1x128xf32, #tpu.memory_space<vmem>>, %arg4: memref<128x128xbf16, #tpu.memory_space<vmem>>, %arg5: memref<1x128xf32, #tpu.memory_space<vmem>>, %arg6: memref<128x128xbf16, #tpu.memory_space<vmem>>, %arg7: memref<1x128xf32, #tpu.memory_space<vmem>>, %arg8: memref<256x128xf32, #tpu.memory_space<vmem>>) attributes {dimension_semantics = [#tpu.dimension_semantics<parallel>], iteration_bounds = array<i64: 1>, scalar_prefetch = 0 : i64, scratch_operands = 0 : i64, tpu.core_type = #tpu.core_type<tc>, window_params = [{transform_indices = @transform_0, window_bounds = array<i64: 256, 32>}, {pipeline_mode = #tpu.pipeline_mode<synchronous>, transform_indices = @transform_1, window_bounds = array<i64: 32, 128>}, {pipeline_mode = #tpu.pipeline_mode<synchronous>, transform_indices = @transform_2, window_bounds = array<i64: 1, 128>}, {pipeline_mode = #tpu.pipeline_mode<synchronous>, transform_indices = @transform_3, window_bounds = array<i64: 128, 128>}, {pipeline_mode = #tpu.pipeline_mode<synchronous>, transform_indices = @transform_4, window_bounds = array<i64: 1, 128>}, {pipeline_mode = #tpu.pipeline_mode<synchronous>, transform_indices = @transform_5, window_bounds = array<i64: 128, 128>}, {pipeline_mode = #tpu.pipeline_mode<synchronous>, transform_indices = @transform_6, window_bounds = array<i64: 1, 128>}, {transform_indices = @transform_7, window_bounds = array<i64: 256, 128>}]} {
    %c0 = arith.constant 0 : index
    %c0_0 = arith.constant 0 : index
    %0 = vector.load %arg1[%c0, %c0_0] : memref<256x32xbf16, #tpu.memory_space<vmem>>, vector<256x32xbf16>
    %c0_1 = arith.constant 0 : index
    %c0_2 = arith.constant 0 : index
    %1 = vector.load %arg2[%c0_1, %c0_2] : memref<32x128xbf16, #tpu.memory_space<vmem>>, vector<32x128xbf16>
    %cst = arith.constant dense<0.000000e+00> : vector<256x128xf32>
    %2 = tpu.matmul %0, %1, %cst {dimension_numbers = #tpu.dot_dimension_numbers<[1], [0], [0], [1], [0, 0, 1, 1], [], []>} : vector<256x32xbf16>, vector<32x128xbf16>, vector<256x128xf32> -> vector<256x128xf32>
    %c0_3 = arith.constant 0 : index
    %c0_4 = arith.constant 0 : index
    %3 = vector.load %arg3[%c0_3, %c0_4] : memref<1x128xf32, #tpu.memory_space<vmem>>, vector<1x128xf32>
    %4 = vector.broadcast %3 : vector<1x128xf32> to vector<256x128xf32>
    %5 = arith.addf %2, %4 : vector<256x128xf32>
    %cst_5 = arith.constant 0.000000e+00 : f32
    %6 = vector.broadcast %cst_5 : f32 to vector<256x128xf32>
    %7 = arith.maximumf %5, %6 : vector<256x128xf32>
    %8 = arith.truncf %7 : vector<256x128xf32> to vector<256x128xbf16>
    %c0_6 = arith.constant 0 : index
    %c0_7 = arith.constant 0 : index
    %9 = vector.load %arg4[%c0_6, %c0_7] : memref<128x128xbf16, #tpu.memory_space<vmem>>, vector<128x128xbf16>
    %cst_8 = arith.constant dense<0.000000e+00> : vector<256x128xf32>
    %10 = tpu.matmul %8, %9, %cst_8 {dimension_numbers = #tpu.dot_dimension_numbers<[1], [0], [0], [1], [0, 0, 1, 1], [], []>} : vector<256x128xbf16>, vector<128x128xbf16>, vector<256x128xf32> -> vector<256x128xf32>
    %c0_9 = arith.constant 0 : index
    %c0_10 = arith.constant 0 : index
    %11 = vector.load %arg5[%c0_9, %c0_10] : memref<1x128xf32, #tpu.memory_space<vmem>>, vector<1x128xf32>
    %12 = vector.broadcast %11 : vector<1x128xf32> to vector<256x128xf32>
    %13 = arith.addf %10, %12 : vector<256x128xf32>
    %cst_11 = arith.constant 0.000000e+00 : f32
    %14 = vector.broadcast %cst_11 : f32 to vector<256x128xf32>
    %15 = arith.maximumf %13, %14 : vector<256x128xf32>
    %16 = arith.truncf %15 : vector<256x128xf32> to vector<256x128xbf16>
    %c0_12 = arith.constant 0 : index
    %c0_13 = arith.constant 0 : index
    %17 = vector.load %arg6[%c0_12, %c0_13] : memref<128x128xbf16, #tpu.memory_space<vmem>>, vector<128x128xbf16>
    %cst_14 = arith.constant dense<0.000000e+00> : vector<256x128xf32>
    %18 = tpu.matmul %16, %17, %cst_14 {dimension_numbers = #tpu.dot_dimension_numbers<[1], [0], [0], [1], [0, 0, 1, 1], [], []>} : vector<256x128xbf16>, vector<128x128xbf16>, vector<256x128xf32> -> vector<256x128xf32>
    %c0_15 = arith.constant 0 : index
    %c0_16 = arith.constant 0 : index
    %19 = vector.load %arg7[%c0_15, %c0_16] : memref<1x128xf32, #tpu.memory_space<vmem>>, vector<1x128xf32>
    %20 = vector.broadcast %19 : vector<1x128xf32> to vector<256x128xf32>
    %21 = arith.addf %18, %20 : vector<256x128xf32>
    %cst_17 = arith.constant dense<0xFF800000> : vector<256xf32>
    %22 = vector.multi_reduction <maximumf>, %21, %cst_17 [1] : vector<256x128xf32> to vector<256xf32>
    %23 = vector.shape_cast %22 : vector<256xf32> to vector<256x1xf32>
    %24 = vector.broadcast %23 : vector<256x1xf32> to vector<256x128xf32>
    %25 = arith.subf %21, %24 : vector<256x128xf32>
    %26 = math.exp %25 : vector<256x128xf32>
    %cst_18 = arith.constant dense<0.000000e+00> : vector<256xf32>
    %27 = vector.multi_reduction <add>, %26, %cst_18 [1] : vector<256x128xf32> to vector<256xf32>
    %28 = vector.shape_cast %27 : vector<256xf32> to vector<256x1xf32>
    %29 = vector.broadcast %28 : vector<256x1xf32> to vector<256x128xf32>
    %30 = arith.divf %26, %29 : vector<256x128xf32>
    %c0_19 = arith.constant 0 : index
    %c0_20 = arith.constant 0 : index
    %31 = vector.load %arg8[%c0_19, %c0_20] : memref<256x128xf32, #tpu.memory_space<vmem>>, vector<256x128xf32>
    tpu.vector_store %arg8[%c0_19, %c0_20], %30 {strides = array<i32>} : memref<256x128xf32, #tpu.memory_space<vmem>>, vector<256x128xf32>,
    return
  }
  func.func @transform_0(%arg0: i32) -> (i32, i32) {
    %c0_i32 = arith.constant 0 : i32
    %c0_i32_0 = arith.constant 0 : i32
    return %arg0, %c0_i32 : i32, i32
  }
  func.func @transform_1(%arg0: i32) -> (i32, i32) {
    %c0_i32 = arith.constant 0 : i32
    %c0_i32_0 = arith.constant 0 : i32
    %c0_i32_1 = arith.constant 0 : i32
    return %c0_i32, %c0_i32_0 : i32, i32
  }
  func.func @transform_2(%arg0: i32) -> (i32, i32) {
    %c0_i32 = arith.constant 0 : i32
    %c0_i32_0 = arith.constant 0 : i32
    %c0_i32_1 = arith.constant 0 : i32
    return %c0_i32, %c0_i32_0 : i32, i32
  }
  func.func @transform_3(%arg0: i32) -> (i32, i32) {
    %c0_i32 = arith.constant 0 : i32
    %c0_i32_0 = arith.constant 0 : i32
    %c0_i32_1 = arith.constant 0 : i32
    return %c0_i32, %c0_i32_0 : i32, i32
  }
  func.func @transform_4(%arg0: i32) -> (i32, i32) {
    %c0_i32 = arith.constant 0 : i32
    %c0_i32_0 = arith.constant 0 : i32
    %c0_i32_1 = arith.constant 0 : i32
    return %c0_i32, %c0_i32_0 : i32, i32
  }
  func.func @transform_5(%arg0: i32) -> (i32, i32) {
    %c0_i32 = arith.constant 0 : i32
    %c0_i32_0 = arith.constant 0 : i32
    %c0_i32_1 = arith.constant 0 : i32
    return %c0_i32, %c0_i32_0 : i32, i32
  }
  func.func @transform_6(%arg0: i32) -> (i32, i32) {
    %c0_i32 = arith.constant 0 : i32
    %c0_i32_0 = arith.constant 0 : i32
    %c0_i32_1 = arith.constant 0 : i32
    return %c0_i32, %c0_i32_0 : i32, i32
  }
  func.func @transform_7(%arg0: i32) -> (i32, i32) {
    %c0_i32 = arith.constant 0 : i32
    %c0_i32_0 = arith.constant 0 : i32
    return %arg0, %c0_i32 : i32, i32
  }
}

</mosaic_0001>

<llo_original>
// kernel: _lambda_.1
$region0: #{_lambda_.1}
  #allocation0 [shape = 'u32[]', space=smem, size = 0x4, offset = 0x4, fixed_abs, tag = 'smem constant byte address 0x4 - core index']
  #allocation1 [shape = 'u32[72,128]{1,0:T(1,128)}', space=vmem, size = 0x9000, scoped, tag = 'internal scratch']
  %s0 = inlined_call_operand.vmem [shape: bf16[256,32], index: 0, kind: input, shape index: {}]
  %s1 = inlined_call_operand.vmem [shape: bf16[32,128], index: 1, kind: input, shape index: {}]
  %s2 = inlined_call_operand.vmem [shape: f32[1,128], index: 2, kind: input, shape index: {}]
  %s3 = inlined_call_operand.vmem [shape: bf16[128,128], index: 3, kind: input, shape index: {}]
  %s4 = inlined_call_operand.vmem [shape: f32[1,128], index: 4, kind: input, shape index: {}]
  %s5 = inlined_call_operand.vmem [shape: bf16[128,128], index: 5, kind: input, shape index: {}]
  %s6 = inlined_call_operand.vmem [shape: f32[1,128], index: 6, kind: input, shape index: {}]
  %s7 = inlined_call_operand.vmem [shape: f32[256,128], index: 7, kind: output, shape index: {}]
  %s8 = sld [smem:[#allocation0]]
  $region38: #{_lambda_.1} parent=0
    _
  %s10 = ssub.s32 1, %s8
  %s11 = scalar_select 0, %s10, %s8
  // Predicated region
  $region2: #{_lambda_.1} parent=0 // pred_check
    _
  $region3: #{_lambda_.1} parent=0 // pred_check_branch
    %13 = sbr.rel (0) target = $region5
  $region4: #{_lambda_.1} parent=0 // pred_region
    _
  $region5: #{_lambda_.1} parent=0 // pred_fallthru
    _
  // Predicated region
  $region6: #{_lambda_.1} parent=0 // pred_check
    _
  $region7: #{_lambda_.1} parent=0 // pred_check_branch
    %15 = sbr.rel (0) target = $region9
  $region8: #{_lambda_.1} parent=0 // pred_region
    _
  $region9: #{_lambda_.1} parent=0 // pred_fallthru
    _
  // Predicated region
  $region10: #{_lambda_.1} parent=0 // pred_check
    _
  $region11: #{_lambda_.1} parent=0 // pred_check_branch
    %17 = sbr.rel (0) target = $region13
  $region12: #{_lambda_.1} parent=0 // pred_region
    _
  $region13: #{_lambda_.1} parent=0 // pred_fallthru
    _
  // Predicated region
  $region14: #{_lambda_.1} parent=0 // pred_check
    _
  $region15: #{_lambda_.1} parent=0 // pred_check_branch
    %19 = sbr.rel (0) target = $region17
  $region16: #{_lambda_.1} parent=0 // pred_region
    _
  $region17: #{_lambda_.1} parent=0 // pred_fallthru
    _
  // Predicated region
  $region18: #{_lambda_.1} parent=0 // pred_check
    _
  $region19: #{_lambda_.1} parent=0 // pred_check_branch
    %21 = sbr.rel (0) target = $region21
  $region20: #{_lambda_.1} parent=0 // pred_region
    _
  $region21: #{_lambda_.1} parent=0 // pred_fallthru
    _
  // Predicated region
  $region22: #{_lambda_.1} parent=0 // pred_check
    _
  $region23: #{_lambda_.1} parent=0 // pred_check_branch
    %23 = sbr.rel (0) target = $region25
  $region24: #{_lambda_.1} parent=0 // pred_region
    _
  $region25: #{_lambda_.1} parent=0 // pred_fallthru
    _
  // Predicated region
  $region26: #{_lambda_.1} parent=0 // pred_check
    _
  $region27: #{_lambda_.1} parent=0 // pred_check_branch
    %25 = sbr.rel (0) target = $region29
  $region28: #{_lambda_.1} parent=0 // pred_region
    _
  $region29: #{_lambda_.1} parent=0 // pred_fallthru
    _
  %v27 = vld [vmem:[%s0] sm:$0xf]
  %v28 = vld [vmem:[%s0 + $0x4] sm:$0xf]
  %v29 = vld [vmem:[%s0 + $0x8] sm:$0xf]
  %v30 = vld [vmem:[%s0 + $0xc] sm:$0xf]
  %v31 = vld [vmem:[%s0 + $0x10] sm:$0xf]
  %v32 = vld [vmem:[%s0 + $0x14] sm:$0xf]
  %v33 = vld [vmem:[%s0 + $0x18] sm:$0xf]
  %v34 = vld [vmem:[%s0 + $0x1c] sm:$0xf]
  %v35 = vld [vmem:[%s0 + $0x20] sm:$0xf]
  %v36 = vld [vmem:[%s0 + $0x24] sm:$0xf]
  %v37 = vld [vmem:[%s0 + $0x28] sm:$0xf]
  %v38 = vld [vmem:[%s0 + $0x2c] sm:$0xf]
  %v39 = vld [vmem:[%s0 + $0x30] sm:$0xf]
  %v40 = vld [vmem:[%s0 + $0x34] sm:$0xf]
  %v41 = vld [vmem:[%s0 + $0x38] sm:$0xf]
  %v42 = vld [vmem:[%s0 + $0x3c] sm:$0xf]
  %v43 = vld [vmem:[%s0 + $0x40] sm:$0xf]
  %v44 = vld [vmem:[%s0 + $0x44] sm:$0xf]
  %v45 = vld [vmem:[%s0 + $0x48] sm:$0xf]
  %v46 = vld [vmem:[%s0 + $0x4c] sm:$0xf]
  %v47 = vld [vmem:[%s0 + $0x50] sm:$0xf]
  %v48 = vld [vmem:[%s0 + $0x54] sm:$0xf]
  %v49 = vld [vmem:[%s0 + $0x58] sm:$0xf]
  %v50 = vld [vmem:[%s0 + $0x5c] sm:$0xf]
  %v51 = vld [vmem:[%s0 + $0x60] sm:$0xf]
  %v52 = vld [vmem:[%s0 + $0x64] sm:$0xf]
  %v53 = vld [vmem:[%s0 + $0x68] sm:$0xf]
  %v54 = vld [vmem:[%s0 + $0x6c] sm:$0xf]
  %v55 = vld [vmem:[%s0 + $0x70] sm:$0xf]
  %v56 = vld [vmem:[%s0 + $0x74] sm:$0xf]
  %v57 = vld [vmem:[%s0 + $0x78] sm:$0xf]
  %v58 = vld [vmem:[%s0 + $0x7c] sm:$0xf]
  %v59 = vld [vmem:[%s1] sm:$0xf]
  %v60 = vld [vmem:[%s1 + $0x4] sm:$0xf]
  %v61 = vld [vmem:[%s1 + $0x8] sm:$0xf]
  %v62 = vld [vmem:[%s1 + $0xc] sm:$0xf]
  %v63 = vld [vmem:[%s2] sm:$0x1]
  %v65 = vperm.slane %v63, 0
  %v99 = vunpack.c.l.b16 %v27
  %v100 = vunpack.c.l.b16 %v28
  %v101 = vunpack.c.l.b16 %v29
  %v102 = vunpack.c.l.b16 %v30
  %v103 = vunpack.c.l.b16 %v31
  %v104 = vunpack.c.l.b16 %v32
  %v105 = vunpack.c.l.b16 %v33
  %v106 = vunpack.c.l.b16 %v34
  %v107 = vunpack.c.l.b16 %v35
  %v108 = vunpack.c.l.b16 %v36
  %v109 = vunpack.c.l.b16 %v37
  %v110 = vunpack.c.l.b16 %v38
  %v111 = vunpack.c.l.b16 %v39
  %v112 = vunpack.c.l.b16 %v40
  %v113 = vunpack.c.l.b16 %v41
  %v114 = vunpack.c.l.b16 %v42
  %v115 = vunpack.c.l.b16 %v43
  %v116 = vunpack.c.l.b16 %v44
  %v117 = vunpack.c.l.b16 %v45
  %v118 = vunpack.c.l.b16 %v46
  %v119 = vunpack.c.l.b16 %v47
  %v120 = vunpack.c.l.b16 %v48
  %v121 = vunpack.c.l.b16 %v49
  %v122 = vunpack.c.l.b16 %v50
  %v123 = vunpack.c.l.b16 %v51
  %v124 = vunpack.c.l.b16 %v52
  %v125 = vunpack.c.l.b16 %v53
  %v126 = vunpack.c.l.b16 %v54
  %v127 = vunpack.c.l.b16 %v55
  %v128 = vunpack.c.l.b16 %v56
  %v129 = vunpack.c.l.b16 %v57
  %v130 = vunpack.c.l.b16 %v58
  %v131 = vpack.c.b16 %v100, %v99
  %v132 = vpack.c.b16 %v102, %v101
  %v133 = vpack.c.b16 %v104, %v103
  %v134 = vpack.c.b16 %v106, %v105
  %v135 = vpack.c.b16 %v108, %v107
  %v136 = vpack.c.b16 %v110, %v109
  %v137 = vpack.c.b16 %v112, %v111
  %v138 = vpack.c.b16 %v114, %v113
  %v139 = vpack.c.b16 %v116, %v115
  %v140 = vpack.c.b16 %v118, %v117
  %v141 = vpack.c.b16 %v120, %v119
  %v142 = vpack.c.b16 %v122, %v121
  %v143 = vpack.c.b16 %v124, %v123
  %v144 = vpack.c.b16 %v126, %v125
  %v145 = vpack.c.b16 %v128, %v127
  %v146 = vpack.c.b16 %v130, %v129
  %v151 = vunpack.c.l.b16 %v59
  %v152 = vunpack.c.l.b16 %v60
  %v153 = vunpack.c.l.b16 %v61
  %v154 = vunpack.c.l.b16 %v62
  %v155 = vpack.c.b16 %v152, %v151
  %v156 = vpack.c.b16 %v154, %v153
  %vm159 = vcmask 261120
  %v161 = vsel %vm159, %v131, 0
  %v164 = vsel %vm159, %v132, 0
  %v167 = vsel %vm159, %v133, 0
  %v170 = vsel %vm159, %v134, 0
  %v173 = vsel %vm159, %v135, 0
  %v176 = vsel %vm159, %v136, 0
  %v179 = vsel %vm159, %v137, 0
  %v182 = vsel %vm159, %v138, 0
  %v185 = vsel %vm159, %v139, 0
  %v188 = vsel %vm159, %v140, 0
  %v191 = vsel %vm159, %v141, 0
  %v194 = vsel %vm159, %v142, 0
  %v197 = vsel %vm159, %v143, 0
  %v200 = vsel %vm159, %v144, 0
  %v203 = vsel %vm159, %v145, 0
  %v206 = vsel %vm159, %v146, 0
  %208 = vmatpush.bf16.msra.mxu0 0
  %209 = vmatpush.bf16.msra.mxu0 0
  %210 = vmatpush.bf16.msra.mxu0 0
  %211 = vmatpush.bf16.msra.mxu0 0
  %212 = vmatpush.bf16.msra.mxu0 0
  %213 = vmatpush.bf16.msra.mxu0 0
  %214 = vmatpush.bf16.msra.mxu0 %v156
  %215 = vmatpush.bf16.msra.mxu0 %v155
  %216 = vmatmul.bf16.gmra.mxu0 %v161
  %v217 = vpop.f32.mrf.mxu0
  %v218 = vadd.f32 %v65, %v217
  %v219 = vpop.f32.mrf.mxu0
  %v220 = vadd.f32 %v65, %v219
  %221 = vmatmul.bf16.gmra.mxu0 %v164
  %v222 = vpop.f32.mrf.mxu0
  %v223 = vadd.f32 %v65, %v222
  %v224 = vpop.f32.mrf.mxu0
  %v225 = vadd.f32 %v65, %v224
  %226 = vmatmul.bf16.gmra.mxu0 %v167
  %v227 = vpop.f32.mrf.mxu0
  %v228 = vadd.f32 %v65, %v227
  %v229 = vpop.f32.mrf.mxu0
  %v230 = vadd.f32 %v65, %v229
  %231 = vmatmul.bf16.gmra.mxu0 %v170
  %v232 = vpop.f32.mrf.mxu0
  %v233 = vadd.f32 %v65, %v232
  %v234 = vpop.f32.mrf.mxu0
  %v235 = vadd.f32 %v65, %v234
  %236 = vmatmul.bf16.gmra.mxu0 %v173
  %v237 = vpop.f32.mrf.mxu0
  %v238 = vadd.f32 %v65, %v237
  %v239 = vpop.f32.mrf.mxu0
  %v240 = vadd.f32 %v65, %v239
  %241 = vmatmul.bf16.gmra.mxu0 %v176
  %v242 = vpop.f32.mrf.mxu0
  %v243 = vadd.f32 %v65, %v242
  %v244 = vpop.f32.mrf.mxu0
  %v245 = vadd.f32 %v65, %v244
  %246 = vmatmul.bf16.gmra.mxu0 %v179
  %v247 = vpop.f32.mrf.mxu0
  %v248 = vadd.f32 %v65, %v247
  %v249 = vpop.f32.mrf.mxu0
  %v250 = vadd.f32 %v65, %v249
  %251 = vmatmul.bf16.gmra.mxu0 %v182
  %v252 = vpop.f32.mrf.mxu0
  %v253 = vadd.f32 %v65, %v252
  %v254 = vpop.f32.mrf.mxu0
  %v255 = vadd.f32 %v65, %v254
  %256 = vmatmul.bf16.gmra.mxu0 %v185
  %v257 = vpop.f32.mrf.mxu0
  %v258 = vadd.f32 %v65, %v257
  %v259 = vpop.f32.mrf.mxu0
  %v260 = vadd.f32 %v65, %v259
  %261 = vmatmul.bf16.gmra.mxu0 %v188
  %v262 = vpop.f32.mrf.mxu0
  %v263 = vadd.f32 %v65, %v262
  %v264 = vpop.f32.mrf.mxu0
  %v265 = vadd.f32 %v65, %v264
  %266 = vmatmul.bf16.gmra.mxu0 %v191
  %v267 = vpop.f32.mrf.mxu0
  %v268 = vadd.f32 %v65, %v267
  %v269 = vpop.f32.mrf.mxu0
  %v270 = vadd.f32 %v65, %v269
  %271 = vmatmul.bf16.gmra.mxu0 %v194
  %v272 = vpop.f32.mrf.mxu0
  %v273 = vadd.f32 %v65, %v272
  %v274 = vpop.f32.mrf.mxu0
  %v275 = vadd.f32 %v65, %v274
  %276 = vmatmul.bf16.gmra.mxu0 %v197
  %v277 = vpop.f32.mrf.mxu0
  %v278 = vadd.f32 %v65, %v277
  %v279 = vpop.f32.mrf.mxu0
  %v280 = vadd.f32 %v65, %v279
  %281 = vmatmul.bf16.gmra.mxu0 %v200
  %v282 = vpop.f32.mrf.mxu0
  %v283 = vadd.f32 %v65, %v282
  %v284 = vpop.f32.mrf.mxu0
  %v285 = vadd.f32 %v65, %v284
  %286 = vmatmul.bf16.gmra.mxu0 %v203
  %v287 = vpop.f32.mrf.mxu0
  %v288 = vadd.f32 %v65, %v287
  %v289 = vpop.f32.mrf.mxu0
  %v290 = vadd.f32 %v65, %v289
  %291 = vmatmul.bf16.gmra.mxu0 %v206
  %v292 = vpop.f32.mrf.mxu0
  %v293 = vadd.f32 %v65, %v292
  %v294 = vpop.f32.mrf.mxu0
  %v295 = vadd.f32 %v65, %v294
  %296 = vdwg.mxu0
  %v297 = vmax.f32 %v218, 0.0
  %v298 = vmax.f32 %v220, 0.0
  %v299 = vmax.f32 %v223, 0.0
  %v300 = vmax.f32 %v225, 0.0
  %v301 = vmax.f32 %v228, 0.0
  %v302 = vmax.f32 %v230, 0.0
  %v303 = vmax.f32 %v233, 0.0
  %v304 = vmax.f32 %v235, 0.0
  %v305 = vmax.f32 %v238, 0.0
  %v306 = vmax.f32 %v240, 0.0
  %v307 = vmax.f32 %v243, 0.0
  %v308 = vmax.f32 %v245, 0.0
  %v309 = vmax.f32 %v248, 0.0
  %v310 = vmax.f32 %v250, 0.0
  %v311 = vmax.f32 %v253, 0.0
  %v312 = vmax.f32 %v255, 0.0
  %v313 = vmax.f32 %v258, 0.0
  %v314 = vmax.f32 %v260, 0.0
  %v315 = vmax.f32 %v263, 0.0
  %v316 = vmax.f32 %v265, 0.0
  %v317 = vmax.f32 %v268, 0.0
  %v318 = vmax.f32 %v270, 0.0
  %v319 = vmax.f32 %v273, 0.0
  %v320 = vmax.f32 %v275, 0.0
  %v321 = vmax.f32 %v278, 0.0
  %v322 = vmax.f32 %v280, 0.0
  %v323 = vmax.f32 %v283, 0.0
  %v324 = vmax.f32 %v285, 0.0
  %v325 = vmax.f32 %v288, 0.0
  %v326 = vmax.f32 %v290, 0.0
  %v327 = vmax.f32 %v293, 0.0
  %v328 = vmax.f32 %v295, 0.0
  %v329 = vpack.c.bf16 %v298, %v297
  %v330 = vpack.c.bf16 %v300, %v299
  %v331 = vpack.c.bf16 %v302, %v301
  %v332 = vpack.c.bf16 %v304, %v303
  %v333 = vpack.c.bf16 %v306, %v305
  %v334 = vpack.c.bf16 %v308, %v307
  %v335 = vpack.c.bf16 %v310, %v309
  %v336 = vpack.c.bf16 %v312, %v311
  %v337 = vpack.c.bf16 %v314, %v313
  %v338 = vpack.c.bf16 %v316, %v315
  %v339 = vpack.c.bf16 %v318, %v317
  %v340 = vpack.c.bf16 %v320, %v319
  %v341 = vpack.c.bf16 %v322, %v321
  %v342 = vpack.c.bf16 %v324, %v323
  %v343 = vpack.c.bf16 %v326, %v325
  %v344 = vpack.c.bf16 %v328, %v327
  %v345 = vld [vmem:[%s3] sm:$0xf]
  %v346 = vld [vmem:[%s3 + $0x4] sm:$0xf]
  %v347 = vld [vmem:[%s3 + $0x8] sm:$0xf]
  %v348 = vld [vmem:[%s3 + $0xc] sm:$0xf]
  %v349 = vld [vmem:[%s3 + $0x10] sm:$0xf]
  %v350 = vld [vmem:[%s3 + $0x14] sm:$0xf]
  %v351 = vld [vmem:[%s3 + $0x18] sm:$0xf]
  %v352 = vld [vmem:[%s3 + $0x1c] sm:$0xf]
  %v353 = vld [vmem:[%s3 + $0x20] sm:$0xf]
  %v354 = vld [vmem:[%s3 + $0x24] sm:$0xf]
  %v355 = vld [vmem:[%s3 + $0x28] sm:$0xf]
  %v356 = vld [vmem:[%s3 + $0x2c] sm:$0xf]
  %v357 = vld [vmem:[%s3 + $0x30] sm:$0xf]
  %v358 = vld [vmem:[%s3 + $0x34] sm:$0xf]
  %v359 = vld [vmem:[%s3 + $0x38] sm:$0xf]
  %v360 = vld [vmem:[%s3 + $0x3c] sm:$0xf]
  %v361 = vld [vmem:[%s4] sm:$0x1]
  %v363 = vperm.slane %v361, 0
  %v381 = vunpack.c.l.b16 %v345
  %v382 = vunpack.c.l.b16 %v346
  %v383 = vunpack.c.l.b16 %v347
  %v384 = vunpack.c.l.b16 %v348
  %v385 = vunpack.c.l.b16 %v349
  %v386 = vunpack.c.l.b16 %v350
  %v387 = vunpack.c.l.b16 %v351
  %v388 = vunpack.c.l.b16 %v352
  %v389 = vunpack.c.l.b16 %v353
  %v390 = vunpack.c.l.b16 %v354
  %v391 = vunpack.c.l.b16 %v355
  %v392 = vunpack.c.l.b16 %v356
  %v393 = vunpack.c.l.b16 %v357
  %v394 = vunpack.c.l.b16 %v358
  %v395 = vunpack.c.l.b16 %v359
  %v396 = vunpack.c.l.b16 %v360
  %v397 = vpack.c.b16 %v382, %v381
  %v398 = vpack.c.b16 %v384, %v383
  %v399 = vpack.c.b16 %v386, %v385
  %v400 = vpack.c.b16 %v388, %v387
  %v401 = vpack.c.b16 %v390, %v389
  %v402 = vpack.c.b16 %v392, %v391
  %v403 = vpack.c.b16 %v394, %v393
  %v404 = vpack.c.b16 %v396, %v395
  %413 = vmatpush.bf16.msra.mxu0 %v404
  %414 = vmatpush.bf16.msra.mxu0 %v403
  %415 = vmatpush.bf16.msra.mxu0 %v402
  %416 = vmatpush.bf16.msra.mxu0 %v401
  %417 = vmatpush.bf16.msra.mxu0 %v400
  %418 = vmatpush.bf16.msra.mxu0 %v399
  %419 = vmatpush.bf16.msra.mxu0 %v398
  %420 = vmatpush.bf16.msra.mxu0 %v397
  %421 = vmatmul.bf16.gmra.mxu0 %v329
  %v422 = vpop.f32.mrf.mxu0
  %v423 = vadd.f32 %v363, %v422
  %v424 = vpop.f32.mrf.mxu0
  %v425 = vadd.f32 %v363, %v424
  %426 = vmatmul.bf16.gmra.mxu0 %v330
  %v427 = vpop.f32.mrf.mxu0
  %v428 = vadd.f32 %v363, %v427
  %v429 = vpop.f32.mrf.mxu0
  %v430 = vadd.f32 %v363, %v429
  %431 = vmatmul.bf16.gmra.mxu0 %v331
  %v432 = vpop.f32.mrf.mxu0
  %v433 = vadd.f32 %v363, %v432
  %v434 = vpop.f32.mrf.mxu0
  %v435 = vadd.f32 %v363, %v434
  %436 = vmatmul.bf16.gmra.mxu0 %v332
  %v437 = vpop.f32.mrf.mxu0
  %v438 = vadd.f32 %v363, %v437
  %v439 = vpop.f32.mrf.mxu0
  %v440 = vadd.f32 %v363, %v439
  %441 = vmatmul.bf16.gmra.mxu0 %v333
  %v442 = vpop.f32.mrf.mxu0
  %v443 = vadd.f32 %v363, %v442
  %v444 = vpop.f32.mrf.mxu0
  %v445 = vadd.f32 %v363, %v444
  %446 = vmatmul.bf16.gmra.mxu0 %v334
  %v447 = vpop.f32.mrf.mxu0
  %v448 = vadd.f32 %v363, %v447
  %v449 = vpop.f32.mrf.mxu0
  %v450 = vadd.f32 %v363, %v449
  %451 = vmatmul.bf16.gmra.mxu0 %v335
  %v452 = vpop.f32.mrf.mxu0
  %v453 = vadd.f32 %v363, %v452
  %v454 = vpop.f32.mrf.mxu0
  %v455 = vadd.f32 %v363, %v454
  %456 = vmatmul.bf16.gmra.mxu0 %v336
  %v457 = vpop.f32.mrf.mxu0
  %v458 = vadd.f32 %v363, %v457
  %v459 = vpop.f32.mrf.mxu0
  %v460 = vadd.f32 %v363, %v459
  %461 = vmatmul.bf16.gmra.mxu0 %v337
  %v462 = vpop.f32.mrf.mxu0
  %v463 = vadd.f32 %v363, %v462
  %v464 = vpop.f32.mrf.mxu0
  %v465 = vadd.f32 %v363, %v464
  %466 = vmatmul.bf16.gmra.mxu0 %v338
  %v467 = vpop.f32.mrf.mxu0
  %v468 = vadd.f32 %v363, %v467
  %v469 = vpop.f32.mrf.mxu0
  %v470 = vadd.f32 %v363, %v469
  %471 = vmatmul.bf16.gmra.mxu0 %v339
  %v472 = vpop.f32.mrf.mxu0
  %v473 = vadd.f32 %v363, %v472
  %v474 = vpop.f32.mrf.mxu0
  %v475 = vadd.f32 %v363, %v474
  %476 = vmatmul.bf16.gmra.mxu0 %v340
  %v477 = vpop.f32.mrf.mxu0
  %v478 = vadd.f32 %v363, %v477
  %v479 = vpop.f32.mrf.mxu0
  %v480 = vadd.f32 %v363, %v479
  %481 = vmatmul.bf16.gmra.mxu0 %v341
  %v482 = vpop.f32.mrf.mxu0
  %v483 = vadd.f32 %v363, %v482
  %v484 = vpop.f32.mrf.mxu0
  %v485 = vadd.f32 %v363, %v484
  %486 = vmatmul.bf16.gmra.mxu0 %v342
  %v487 = vpop.f32.mrf.mxu0
  %v488 = vadd.f32 %v363, %v487
  %v489 = vpop.f32.mrf.mxu0
  %v490 = vadd.f32 %v363, %v489
  %491 = vmatmul.bf16.gmra.mxu0 %v343
  %v492 = vpop.f32.mrf.mxu0
  %v493 = vadd.f32 %v363, %v492
  %v494 = vpop.f32.mrf.mxu0
  %v495 = vadd.f32 %v363, %v494
  %496 = vmatmul.bf16.gmra.mxu0 %v344
  %v497 = vpop.f32.mrf.mxu0
  %v498 = vadd.f32 %v363, %v497
  %v499 = vpop.f32.mrf.mxu0
  %v500 = vadd.f32 %v363, %v499
  %501 = vdwg.mxu0
  %v502 = vmax.f32 %v423, 0.0
  %v503 = vmax.f32 %v425, 0.0
  %v504 = vmax.f32 %v428, 0.0
  %v505 = vmax.f32 %v430, 0.0
  %v506 = vmax.f32 %v433, 0.0
  %v507 = vmax.f32 %v435, 0.0
  %v508 = vmax.f32 %v438, 0.0
  %v509 = vmax.f32 %v440, 0.0
  %v510 = vmax.f32 %v443, 0.0
  %v511 = vmax.f32 %v445, 0.0
  %v512 = vmax.f32 %v448, 0.0
  %v513 = vmax.f32 %v450, 0.0
  %v514 = vmax.f32 %v453, 0.0
  %v515 = vmax.f32 %v455, 0.0
  %v516 = vmax.f32 %v458, 0.0
  %v517 = vmax.f32 %v460, 0.0
  %v518 = vmax.f32 %v463, 0.0
  %v519 = vmax.f32 %v465, 0.0
  %v520 = vmax.f32 %v468, 0.0
  %v521 = vmax.f32 %v470, 0.0
  %v522 = vmax.f32 %v473, 0.0
  %v523 = vmax.f32 %v475, 0.0
  %v524 = vmax.f32 %v478, 0.0
  %v525 = vmax.f32 %v480, 0.0
  %v526 = vmax.f32 %v483, 0.0
  %v527 = vmax.f32 %v485, 0.0
  %v528 = vmax.f32 %v488, 0.0
  %v529 = vmax.f32 %v490, 0.0
  %v530 = vmax.f32 %v493, 0.0
  %v531 = vmax.f32 %v495, 0.0
  %v532 = vmax.f32 %v498, 0.0
  %v533 = vmax.f32 %v500, 0.0
  %v534 = vpack.c.bf16 %v503, %v502
  %v535 = vpack.c.bf16 %v505, %v504
  %v536 = vpack.c.bf16 %v507, %v506
  %v537 = vpack.c.bf16 %v509, %v508
  %v538 = vpack.c.bf16 %v511, %v510
  %v539 = vpack.c.bf16 %v513, %v512
  %v540 = vpack.c.bf16 %v515, %v514
  %v541 = vpack.c.bf16 %v517, %v516
  %v542 = vpack.c.bf16 %v519, %v518
  %v543 = vpack.c.bf16 %v521, %v520
  %v544 = vpack.c.bf16 %v523, %v522
  %v545 = vpack.c.bf16 %v525, %v524
  %v546 = vpack.c.bf16 %v527, %v526
  %v547 = vpack.c.bf16 %v529, %v528
  %v548 = vpack.c.bf16 %v531, %v530
  %v549 = vpack.c.bf16 %v533, %v532
  %v550 = vld [vmem:[%s5] sm:$0xf]
  %v551 = vld [vmem:[%s5 + $0x4] sm:$0xf]
  %v552 = vld [vmem:[%s5 + $0x8] sm:$0xf]
  %v553 = vld [vmem:[%s5 + $0xc] sm:$0xf]
  %v554 = vld [vmem:[%s5 + $0x10] sm:$0xf]
  %v555 = vld [vmem:[%s5 + $0x14] sm:$0xf]
  %v556 = vld [vmem:[%s5 + $0x18] sm:$0xf]
  %v557 = vld [vmem:[%s5 + $0x1c] sm:$0xf]
  %v558 = vld [vmem:[%s5 + $0x20] sm:$0xf]
  %v559 = vld [vmem:[%s5 + $0x24] sm:$0xf]
  %v560 = vld [vmem:[%s5 + $0x28] sm:$0xf]
  %v561 = vld [vmem:[%s5 + $0x2c] sm:$0xf]
  %v562 = vld [vmem:[%s5 + $0x30] sm:$0xf]
  %v563 = vld [vmem:[%s5 + $0x34] sm:$0xf]
  %v564 = vld [vmem:[%s5 + $0x38] sm:$0xf]
  %v565 = vld [vmem:[%s5 + $0x3c] sm:$0xf]
  %v566 = vld [vmem:[%s6] sm:$0x1]
  %v568 = vperm.slane %v566, 0
  %v586 = vunpack.c.l.b16 %v550
  %v587 = vunpack.c.l.b16 %v551
  %v588 = vunpack.c.l.b16 %v552
  %v589 = vunpack.c.l.b16 %v553
  %v590 = vunpack.c.l.b16 %v554
  %v591 = vunpack.c.l.b16 %v555
  %v592 = vunpack.c.l.b16 %v556
  %v593 = vunpack.c.l.b16 %v557
  %v594 = vunpack.c.l.b16 %v558
  %v595 = vunpack.c.l.b16 %v559
  %v596 = vunpack.c.l.b16 %v560
  %v597 = vunpack.c.l.b16 %v561
  %v598 = vunpack.c.l.b16 %v562
  %v599 = vunpack.c.l.b16 %v563
  %v600 = vunpack.c.l.b16 %v564
  %v601 = vunpack.c.l.b16 %v565
  %v602 = vpack.c.b16 %v587, %v586
  %v603 = vpack.c.b16 %v589, %v588
  %v604 = vpack.c.b16 %v591, %v590
  %v605 = vpack.c.b16 %v593, %v592
  %v606 = vpack.c.b16 %v595, %v594
  %v607 = vpack.c.b16 %v597, %v596
  %v608 = vpack.c.b16 %v599, %v598
  %v609 = vpack.c.b16 %v601, %v600
  %618 = vmatpush.bf16.msra.mxu0 %v609
  %619 = vmatpush.bf16.msra.mxu0 %v608
  %620 = vmatpush.bf16.msra.mxu0 %v607
  %621 = vmatpush.bf16.msra.mxu0 %v606
  %622 = vmatpush.bf16.msra.mxu0 %v605
  %623 = vmatpush.bf16.msra.mxu0 %v604
  %624 = vmatpush.bf16.msra.mxu0 %v603
  %625 = vmatpush.bf16.msra.mxu0 %v602
  %626 = vmatmul.bf16.gmra.mxu0 %v534
  %v627 = vpop.f32.mrf.mxu0
  %v628 = vadd.f32 %v568, %v627
  %v629 = vpop.f32.mrf.mxu0
  %v630 = vadd.f32 %v568, %v629
  %631 = vmatmul.bf16.gmra.mxu0 %v535
  %v632 = vpop.f32.mrf.mxu0
  %v633 = vadd.f32 %v568, %v632
  %v634 = vpop.f32.mrf.mxu0
  %v635 = vadd.f32 %v568, %v634
  %636 = vmatmul.bf16.gmra.mxu0 %v536
  %v637 = vpop.f32.mrf.mxu0
  %v638 = vadd.f32 %v568, %v637
  %v639 = vpop.f32.mrf.mxu0
  %v640 = vadd.f32 %v568, %v639
  %641 = vmatmul.bf16.gmra.mxu0 %v537
  %v642 = vpop.f32.mrf.mxu0
  %v643 = vadd.f32 %v568, %v642
  %v644 = vpop.f32.mrf.mxu0
  %v645 = vadd.f32 %v568, %v644
  %646 = vmatmul.bf16.gmra.mxu0 %v538
  %v647 = vpop.f32.mrf.mxu0
  %v648 = vadd.f32 %v568, %v647
  %v649 = vpop.f32.mrf.mxu0
  %v650 = vadd.f32 %v568, %v649
  %651 = vmatmul.bf16.gmra.mxu0 %v539
  %v652 = vpop.f32.mrf.mxu0
  %v653 = vadd.f32 %v568, %v652
  %v654 = vpop.f32.mrf.mxu0
  %v655 = vadd.f32 %v568, %v654
  %656 = vmatmul.bf16.gmra.mxu0 %v540
  %v657 = vpop.f32.mrf.mxu0
  %v658 = vadd.f32 %v568, %v657
  %v659 = vpop.f32.mrf.mxu0
  %v660 = vadd.f32 %v568, %v659
  %661 = vmatmul.bf16.gmra.mxu0 %v541
  %v662 = vpop.f32.mrf.mxu0
  %v663 = vadd.f32 %v568, %v662
  %v664 = vpop.f32.mrf.mxu0
  %v665 = vadd.f32 %v568, %v664
  %666 = vmatmul.bf16.gmra.mxu0 %v542
  %v667 = vpop.f32.mrf.mxu0
  %v668 = vadd.f32 %v568, %v667
  %v669 = vpop.f32.mrf.mxu0
  %v670 = vadd.f32 %v568, %v669
  %671 = vmatmul.bf16.gmra.mxu0 %v543
  %v672 = vpop.f32.mrf.mxu0
  %v673 = vadd.f32 %v568, %v672
  %v674 = vpop.f32.mrf.mxu0
  %v675 = vadd.f32 %v568, %v674
  %676 = vmatmul.bf16.gmra.mxu0 %v544
  %v677 = vpop.f32.mrf.mxu0
  %v678 = vadd.f32 %v568, %v677
  %v679 = vpop.f32.mrf.mxu0
  %v680 = vadd.f32 %v568, %v679
  %681 = vmatmul.bf16.gmra.mxu0 %v545
  %v682 = vpop.f32.mrf.mxu0
  %v683 = vadd.f32 %v568, %v682
  %v684 = vpop.f32.mrf.mxu0
  %v685 = vadd.f32 %v568, %v684
  %686 = vmatmul.bf16.gmra.mxu0 %v546
  %v687 = vpop.f32.mrf.mxu0
  %v688 = vadd.f32 %v568, %v687
  %v689 = vpop.f32.mrf.mxu0
  %v690 = vadd.f32 %v568, %v689
  %691 = vmatmul.bf16.gmra.mxu0 %v547
  %v692 = vpop.f32.mrf.mxu0
  %v693 = vadd.f32 %v568, %v692
  %v694 = vpop.f32.mrf.mxu0
  %v695 = vadd.f32 %v568, %v694
  %696 = vmatmul.bf16.gmra.mxu0 %v548
  %v697 = vpop.f32.mrf.mxu0
  %v698 = vadd.f32 %v568, %v697
  %v699 = vpop.f32.mrf.mxu0
  %v700 = vadd.f32 %v568, %v699
  %701 = vmatmul.bf16.gmra.mxu0 %v549
  %v702 = vpop.f32.mrf.mxu0
  %v703 = vadd.f32 %v568, %v702
  %v704 = vpop.f32.mrf.mxu0
  %v705 = vadd.f32 %v568, %v704
  %706 = vdwg.mxu0
  %707 = vmax.xlane.f32.xlu0 %v628
  %v708 = vpop.xlane.xlu0 %707
  %709 = vmax.xlane.f32.xlu0 %v630
  %v710 = vpop.xlane.xlu0 %709
  %711 = vmax.xlane.f32.xlu0 %v633
  %v712 = vpop.xlane.xlu0 %711
  %713 = vmax.xlane.f32.xlu0 %v635
  %v714 = vpop.xlane.xlu0 %713
  %715 = vmax.xlane.f32.xlu0 %v638
  %v716 = vpop.xlane.xlu0 %715
  %717 = vmax.xlane.f32.xlu0 %v640
  %v718 = vpop.xlane.xlu0 %717
  %719 = vmax.xlane.f32.xlu0 %v643
  %v720 = vpop.xlane.xlu0 %719
  %721 = vmax.xlane.f32.xlu0 %v645
  %v722 = vpop.xlane.xlu0 %721
  %723 = vmax.xlane.f32.xlu0 %v648
  %v724 = vpop.xlane.xlu0 %723
  %725 = vmax.xlane.f32.xlu0 %v650
  %v726 = vpop.xlane.xlu0 %725
  %727 = vmax.xlane.f32.xlu0 %v653
  %v728 = vpop.xlane.xlu0 %727
  %729 = vmax.xlane.f32.xlu0 %v655
  %v730 = vpop.xlane.xlu0 %729
  %731 = vmax.xlane.f32.xlu0 %v658
  %v732 = vpop.xlane.xlu0 %731
  %733 = vmax.xlane.f32.xlu0 %v660
  %v734 = vpop.xlane.xlu0 %733
  %735 = vmax.xlane.f32.xlu0 %v663
  %v736 = vpop.xlane.xlu0 %735
  %737 = vmax.xlane.f32.xlu0 %v665
  %v738 = vpop.xlane.xlu0 %737
  %739 = vmax.xlane.f32.xlu0 %v668
  %v740 = vpop.xlane.xlu0 %739
  %741 = vmax.xlane.f32.xlu0 %v670
  %v742 = vpop.xlane.xlu0 %741
  %743 = vmax.xlane.f32.xlu0 %v673
  %v744 = vpop.xlane.xlu0 %743
  %745 = vmax.xlane.f32.xlu0 %v675
  %v746 = vpop.xlane.xlu0 %745
  %747 = vmax.xlane.f32.xlu0 %v678
  %v748 = vpop.xlane.xlu0 %747
  %749 = vmax.xlane.f32.xlu0 %v680
  %v750 = vpop.xlane.xlu0 %749
  %751 = vmax.xlane.f32.xlu0 %v683
  %v752 = vpop.xlane.xlu0 %751
  %753 = vmax.xlane.f32.xlu0 %v685
  %v754 = vpop.xlane.xlu0 %753
  %755 = vmax.xlane.f32.xlu0 %v688
  %v756 = vpop.xlane.xlu0 %755
  %757 = vmax.xlane.f32.xlu0 %v690
  %v758 = vpop.xlane.xlu0 %757
  %759 = vmax.xlane.f32.xlu0 %v693
  %v760 = vpop.xlane.xlu0 %759
  %761 = vmax.xlane.f32.xlu0 %v695
  %v762 = vpop.xlane.xlu0 %761
  %763 = vmax.xlane.f32.xlu0 %v698
  %v764 = vpop.xlane.xlu0 %763
  %765 = vmax.xlane.f32.xlu0 %v700
  %v766 = vpop.xlane.xlu0 %765
  %767 = vmax.xlane.f32.xlu0 %v703
  %v768 = vpop.xlane.xlu0 %767
  %769 = vmax.xlane.f32.xlu0 %v705
  %v770 = vpop.xlane.xlu0 %769
  %v771 = vsub.f32 %v628, %v708
  %v772 = vsub.f32 %v630, %v710
  %v773 = vsub.f32 %v633, %v712
  %v774 = vsub.f32 %v635, %v714
  %v775 = vsub.f32 %v638, %v716
  %v776 = vsub.f32 %v640, %v718
  %v777 = vsub.f32 %v643, %v720
  %v778 = vsub.f32 %v645, %v722
  %v779 = vsub.f32 %v648, %v724
  %v780 = vsub.f32 %v650, %v726
  %v781 = vsub.f32 %v653, %v728
  %v782 = vsub.f32 %v655, %v730
  %v783 = vsub.f32 %v658, %v732
  %v784 = vsub.f32 %v660, %v734
  %v785 = vsub.f32 %v663, %v736
  %v786 = vsub.f32 %v665, %v738
  %v787 = vsub.f32 %v668, %v740
  %v788 = vsub.f32 %v670, %v742
  %v789 = vsub.f32 %v673, %v744
  %v790 = vsub.f32 %v675, %v746
  %v791 = vsub.f32 %v678, %v748
  %v792 = vsub.f32 %v680, %v750
  %v793 = vsub.f32 %v683, %v752
  %v794 = vsub.f32 %v685, %v754
  %v795 = vsub.f32 %v688, %v756
  %v796 = vsub.f32 %v690, %v758
  %v797 = vsub.f32 %v693, %v760
  %v798 = vsub.f32 %v695, %v762
  %v799 = vsub.f32 %v698, %v764
  %v800 = vsub.f32 %v700, %v766
  %v801 = vsub.f32 %v703, %v768
  %v802 = vsub.f32 %v705, %v770
  %v803 = vmul.f32 %v771, 1.442695
  %v804 = vpow.pop %v803
  %v805 = vmul.f32 %v772, 1.442695
  %v806 = vpow.pop %v805
  %v807 = vmul.f32 %v773, 1.442695
  %v808 = vpow.pop %v807
  %v809 = vmul.f32 %v774, 1.442695
  %v810 = vpow.pop %v809
  %v811 = vmul.f32 %v775, 1.442695
  %v812 = vpow.pop %v811
  %v813 = vmul.f32 %v776, 1.442695
  %v814 = vpow.pop %v813
  %v815 = vmul.f32 %v777, 1.442695
  %v816 = vpow.pop %v815
  %v817 = vmul.f32 %v778, 1.442695
  %v818 = vpow.pop %v817
  %v819 = vmul.f32 %v779, 1.442695
  %v820 = vpow.pop %v819
  %v821 = vmul.f32 %v780, 1.442695
  %v822 = vpow.pop %v821
  %v823 = vmul.f32 %v781, 1.442695
  %v824 = vpow.pop %v823
  %v825 = vmul.f32 %v782, 1.442695
  %v826 = vpow.pop %v825
  %v827 = vmul.f32 %v783, 1.442695
  %v828 = vpow.pop %v827
  %v829 = vmul.f32 %v784, 1.442695
  %v830 = vpow.pop %v829
  %v831 = vmul.f32 %v785, 1.442695
  %v832 = vpow.pop %v831
  %v833 = vmul.f32 %v786, 1.442695
  %v834 = vpow.pop %v833
  %v835 = vmul.f32 %v787, 1.442695
  %v836 = vpow.pop %v835
  %v837 = vmul.f32 %v788, 1.442695
  %v838 = vpow.pop %v837
  %v839 = vmul.f32 %v789, 1.442695
  %v840 = vpow.pop %v839
  %v841 = vmul.f32 %v790, 1.442695
  %v842 = vpow.pop %v841
  %v843 = vmul.f32 %v791, 1.442695
  %v844 = vpow.pop %v843
  %v845 = vmul.f32 %v792, 1.442695
  %v846 = vpow.pop %v845
  %v847 = vmul.f32 %v793, 1.442695
  %v848 = vpow.pop %v847
  %v849 = vmul.f32 %v794, 1.442695
  %v850 = vpow.pop %v849
  %v851 = vmul.f32 %v795, 1.442695
  %v852 = vpow.pop %v851
  %v853 = vmul.f32 %v796, 1.442695
  %v854 = vpow.pop %v853
  %v855 = vmul.f32 %v797, 1.442695
  %v856 = vpow.pop %v855
  %v857 = vmul.f32 %v798, 1.442695
  %v858 = vpow.pop %v857
  %v859 = vmul.f32 %v799, 1.442695
  %v860 = vpow.pop %v859
  %v861 = vmul.f32 %v800, 1.442695
  %v862 = vpow.pop %v861
  %v863 = vmul.f32 %v801, 1.442695
  %v864 = vpow.pop %v863
  %v865 = vmul.f32 %v802, 1.442695
  %v866 = vpow.pop %v865
  %867 = vadd.xlane.f32.xlu0 %v804
  %v868 = vpop.xlane.xlu0 %867
  %869 = vadd.xlane.f32.xlu0 %v806
  %v870 = vpop.xlane.xlu0 %869
  %871 = vadd.xlane.f32.xlu0 %v808
  %v872 = vpop.xlane.xlu0 %871
  %873 = vadd.xlane.f32.xlu0 %v810
  %v874 = vpop.xlane.xlu0 %873
  %875 = vadd.xlane.f32.xlu0 %v812
  %v876 = vpop.xlane.xlu0 %875
  %877 = vadd.xlane.f32.xlu0 %v814
  %v878 = vpop.xlane.xlu0 %877
  %879 = vadd.xlane.f32.xlu0 %v816
  %v880 = vpop.xlane.xlu0 %879
  %881 = vadd.xlane.f32.xlu0 %v818
  %v882 = vpop.xlane.xlu0 %881
  %883 = vadd.xlane.f32.xlu0 %v820
  %v884 = vpop.xlane.xlu0 %883
  %885 = vadd.xlane.f32.xlu0 %v822
  %v886 = vpop.xlane.xlu0 %885
  %887 = vadd.xlane.f32.xlu0 %v824
  %v888 = vpop.xlane.xlu0 %887
  %889 = vadd.xlane.f32.xlu0 %v826
  %v890 = vpop.xlane.xlu0 %889
  %891 = vadd.xlane.f32.xlu0 %v828
  %v892 = vpop.xlane.xlu0 %891
  %893 = vadd.xlane.f32.xlu0 %v830
  %v894 = vpop.xlane.xlu0 %893
  %895 = vadd.xlane.f32.xlu0 %v832
  %v896 = vpop.xlane.xlu0 %895
  %897 = vadd.xlane.f32.xlu0 %v834
  %v898 = vpop.xlane.xlu0 %897
  %899 = vadd.xlane.f32.xlu0 %v836
  %v900 = vpop.xlane.xlu0 %899
  %901 = vadd.xlane.f32.xlu0 %v838
  %v902 = vpop.xlane.xlu0 %901
  %903 = vadd.xlane.f32.xlu0 %v840
  %v904 = vpop.xlane.xlu0 %903
  %905 = vadd.xlane.f32.xlu0 %v842
  %v906 = vpop.xlane.xlu0 %905
  %907 = vadd.xlane.f32.xlu0 %v844
  %v908 = vpop.xlane.xlu0 %907
  %909 = vadd.xlane.f32.xlu0 %v846
  %v910 = vpop.xlane.xlu0 %909
  %911 = vadd.xlane.f32.xlu0 %v848
  %v912 = vpop.xlane.xlu0 %911
  %913 = vadd.xlane.f32.xlu0 %v850
  %v914 = vpop.xlane.xlu0 %913
  %915 = vadd.xlane.f32.xlu0 %v852
  %v916 = vpop.xlane.xlu0 %915
  %917 = vadd.xlane.f32.xlu0 %v854
  %v918 = vpop.xlane.xlu0 %917
  %919 = vadd.xlane.f32.xlu0 %v856
  %v920 = vpop.xlane.xlu0 %919
  %921 = vadd.xlane.f32.xlu0 %v858
  %v922 = vpop.xlane.xlu0 %921
  %923 = vadd.xlane.f32.xlu0 %v860
  %v924 = vpop.xlane.xlu0 %923
  %925 = vadd.xlane.f32.xlu0 %v862
  %v926 = vpop.xlane.xlu0 %925
  %927 = vadd.xlane.f32.xlu0 %v864
  %v928 = vpop.xlane.xlu0 %927
  %929 = vadd.xlane.f32.xlu0 %v866
  %v930 = vpop.xlane.xlu0 %929
  %v931 = vrcp.pop %v868
  %v932 = vmul.f32 %v868, %v931
  %v933 = vsub.f32 1.0, %v932
  %v934 = vmul.f32 %v931, %v933
  %v935 = vadd.f32 %v931, %v934
  %vm936 = vweird.f32 %v868
  %vm937 = vweird.f32 %v931
  %vm938 = vmor %vm936, %vm937
  %v939 = vsel %vm938, %v931, %v935
  %v940 = vand.u32 2147483647, %v868
  %vm941 = vcmp.eq.f32.partialorder %v940, 8.507059e+37
  %v942 = vand.u32 %v868, 2147483648
  %v943 = vor.u32 1.1754944e-38, %v942
  %v944 = vsel %vm941, %v943, %v939
  %v945 = vmul.f32 %v804, %v944
  %v946 = vrcp.pop %v870
  %v947 = vmul.f32 %v870, %v946
  %v948 = vsub.f32 1.0, %v947
  %v949 = vmul.f32 %v946, %v948
  %v950 = vadd.f32 %v946, %v949
  %vm951 = vweird.f32 %v870
  %vm952 = vweird.f32 %v946
  %vm953 = vmor %vm951, %vm952
  %v954 = vsel %vm953, %v946, %v950
  %v955 = vand.u32 2147483647, %v870
  %vm956 = vcmp.eq.f32.partialorder %v955, 8.507059e+37
  %v957 = vand.u32 %v870, 2147483648
  %v958 = vor.u32 1.1754944e-38, %v957
  %v959 = vsel %vm956, %v958, %v954
  %v960 = vmul.f32 %v806, %v959
  %v961 = vrcp.pop %v872
  %v962 = vmul.f32 %v872, %v961
  %v963 = vsub.f32 1.0, %v962
  %v964 = vmul.f32 %v961, %v963
  %v965 = vadd.f32 %v961, %v964
  %vm966 = vweird.f32 %v872
  %vm967 = vweird.f32 %v961
  %vm968 = vmor %vm966, %vm967
  %v969 = vsel %vm968, %v961, %v965
  %v970 = vand.u32 2147483647, %v872
  %vm971 = vcmp.eq.f32.partialorder %v970, 8.507059e+37
  %v972 = vand.u32 %v872, 2147483648
  %v973 = vor.u32 1.1754944e-38, %v972
  %v974 = vsel %vm971, %v973, %v969
  %v975 = vmul.f32 %v808, %v974
  %v976 = vrcp.pop %v874
  %v977 = vmul.f32 %v874, %v976
  %v978 = vsub.f32 1.0, %v977
  %v979 = vmul.f32 %v976, %v978
  %v980 = vadd.f32 %v976, %v979
  %vm981 = vweird.f32 %v874
  %vm982 = vweird.f32 %v976
  %vm983 = vmor %vm981, %vm982
  %v984 = vsel %vm983, %v976, %v980
  %v985 = vand.u32 2147483647, %v874
  %vm986 = vcmp.eq.f32.partialorder %v985, 8.507059e+37
  %v987 = vand.u32 %v874, 2147483648
  %v988 = vor.u32 1.1754944e-38, %v987
  %v989 = vsel %vm986, %v988, %v984
  %v990 = vmul.f32 %v810, %v989
  %v991 = vrcp.pop %v876
  %v992 = vmul.f32 %v876, %v991
  %v993 = vsub.f32 1.0, %v992
  %v994 = vmul.f32 %v991, %v993
  %v995 = vadd.f32 %v991, %v994
  %vm996 = vweird.f32 %v876
  %vm997 = vweird.f32 %v991
  %vm998 = vmor %vm996, %vm997
  %v999 = vsel %vm998, %v991, %v995
  %v1000 = vand.u32 2147483647, %v876
  %vm1001 = vcmp.eq.f32.partialorder %v1000, 8.507059e+37
  %v1002 = vand.u32 %v876, 2147483648
  %v1003 = vor.u32 1.1754944e-38, %v1002
  %v1004 = vsel %vm1001, %v1003, %v999
  %v1005 = vmul.f32 %v812, %v1004
  %v1006 = vrcp.pop %v878
  %v1007 = vmul.f32 %v878, %v1006
  %v1008 = vsub.f32 1.0, %v1007
  %v1009 = vmul.f32 %v1006, %v1008
  %v1010 = vadd.f32 %v1006, %v1009
  %vm1011 = vweird.f32 %v878
  %vm1012 = vweird.f32 %v1006
  %vm1013 = vmor %vm1011, %vm1012
  %v1014 = vsel %vm1013, %v1006, %v1010
  %v1015 = vand.u32 2147483647, %v878
  %vm1016 = vcmp.eq.f32.partialorder %v1015, 8.507059e+37
  %v1017 = vand.u32 %v878, 2147483648
  %v1018 = vor.u32 1.1754944e-38, %v1017
  %v1019 = vsel %vm1016, %v1018, %v1014
  %v1020 = vmul.f32 %v814, %v1019
  %v1021 = vrcp.pop %v880
  %v1022 = vmul.f32 %v880, %v1021
  %v1023 = vsub.f32 1.0, %v1022
  %v1024 = vmul.f32 %v1021, %v1023
  %v1025 = vadd.f32 %v1021, %v1024
  %vm1026 = vweird.f32 %v880
  %vm1027 = vweird.f32 %v1021
  %vm1028 = vmor %vm1026, %vm1027
  %v1029 = vsel %vm1028, %v1021, %v1025
  %v1030 = vand.u32 2147483647, %v880
  %vm1031 = vcmp.eq.f32.partialorder %v1030, 8.507059e+37
  %v1032 = vand.u32 %v880, 2147483648
  %v1033 = vor.u32 1.1754944e-38, %v1032
  %v1034 = vsel %vm1031, %v1033, %v1029
  %v1035 = vmul.f32 %v816, %v1034
  %v1036 = vrcp.pop %v882
  %v1037 = vmul.f32 %v882, %v1036
  %v1038 = vsub.f32 1.0, %v1037
  %v1039 = vmul.f32 %v1036, %v1038
  %v1040 = vadd.f32 %v1036, %v1039
  %vm1041 = vweird.f32 %v882
  %vm1042 = vweird.f32 %v1036
  %vm1043 = vmor %vm1041, %vm1042
  %v1044 = vsel %vm1043, %v1036, %v1040
  %v1045 = vand.u32 2147483647, %v882
  %vm1046 = vcmp.eq.f32.partialorder %v1045, 8.507059e+37
  %v1047 = vand.u32 %v882, 2147483648
  %v1048 = vor.u32 1.1754944e-38, %v1047
  %v1049 = vsel %vm1046, %v1048, %v1044
  %v1050 = vmul.f32 %v818, %v1049
  %v1051 = vrcp.pop %v884
  %v1052 = vmul.f32 %v884, %v1051
  %v1053 = vsub.f32 1.0, %v1052
  %v1054 = vmul.f32 %v1051, %v1053
  %v1055 = vadd.f32 %v1051, %v1054
  %vm1056 = vweird.f32 %v884
  %vm1057 = vweird.f32 %v1051
  %vm1058 = vmor %vm1056, %vm1057
  %v1059 = vsel %vm1058, %v1051, %v1055
  %v1060 = vand.u32 2147483647, %v884
  %vm1061 = vcmp.eq.f32.partialorder %v1060, 8.507059e+37
  %v1062 = vand.u32 %v884, 2147483648
  %v1063 = vor.u32 1.1754944e-38, %v1062
  %v1064 = vsel %vm1061, %v1063, %v1059
  %v1065 = vmul.f32 %v820, %v1064
  %v1066 = vrcp.pop %v886
  %v1067 = vmul.f32 %v886, %v1066
  %v1068 = vsub.f32 1.0, %v1067
  %v1069 = vmul.f32 %v1066, %v1068
  %v1070 = vadd.f32 %v1066, %v1069
  %vm1071 = vweird.f32 %v886
  %vm1072 = vweird.f32 %v1066
  %vm1073 = vmor %vm1071, %vm1072
  %v1074 = vsel %vm1073, %v1066, %v1070
  %v1075 = vand.u32 2147483647, %v886
  %vm1076 = vcmp.eq.f32.partialorder %v1075, 8.507059e+37
  %v1077 = vand.u32 %v886, 2147483648
  %v1078 = vor.u32 1.1754944e-38, %v1077
  %v1079 = vsel %vm1076, %v1078, %v1074
  %v1080 = vmul.f32 %v822, %v1079
  %v1081 = vrcp.pop %v888
  %v1082 = vmul.f32 %v888, %v1081
  %v1083 = vsub.f32 1.0, %v1082
  %v1084 = vmul.f32 %v1081, %v1083
  %v1085 = vadd.f32 %v1081, %v1084
  %vm1086 = vweird.f32 %v888
  %vm1087 = vweird.f32 %v1081
  %vm1088 = vmor %vm1086, %vm1087
  %v1089 = vsel %vm1088, %v1081, %v1085
  %v1090 = vand.u32 2147483647, %v888
  %vm1091 = vcmp.eq.f32.partialorder %v1090, 8.507059e+37
  %v1092 = vand.u32 %v888, 2147483648
  %v1093 = vor.u32 1.1754944e-38, %v1092
  %v1094 = vsel %vm1091, %v1093, %v1089
  %v1095 = vmul.f32 %v824, %v1094
  %v1096 = vrcp.pop %v890
  %v1097 = vmul.f32 %v890, %v1096
  %v1098 = vsub.f32 1.0, %v1097
  %v1099 = vmul.f32 %v1096, %v1098
  %v1100 = vadd.f32 %v1096, %v1099
  %vm1101 = vweird.f32 %v890
  %vm1102 = vweird.f32 %v1096
  %vm1103 = vmor %vm1101, %vm1102
  %v1104 = vsel %vm1103, %v1096, %v1100
  %v1105 = vand.u32 2147483647, %v890
  %vm1106 = vcmp.eq.f32.partialorder %v1105, 8.507059e+37
  %v1107 = vand.u32 %v890, 2147483648
  %v1108 = vor.u32 1.1754944e-38, %v1107
  %v1109 = vsel %vm1106, %v1108, %v1104
  %v1110 = vmul.f32 %v826, %v1109
  %v1111 = vrcp.pop %v892
  %v1112 = vmul.f32 %v892, %v1111
  %v1113 = vsub.f32 1.0, %v1112
  %v1114 = vmul.f32 %v1111, %v1113
  %v1115 = vadd.f32 %v1111, %v1114
  %vm1116 = vweird.f32 %v892
  %vm1117 = vweird.f32 %v1111
  %vm1118 = vmor %vm1116, %vm1117
  %v1119 = vsel %vm1118, %v1111, %v1115
  %v1120 = vand.u32 2147483647, %v892
  %vm1121 = vcmp.eq.f32.partialorder %v1120, 8.507059e+37
  %v1122 = vand.u32 %v892, 2147483648
  %v1123 = vor.u32 1.1754944e-38, %v1122
  %v1124 = vsel %vm1121, %v1123, %v1119
  %v1125 = vmul.f32 %v828, %v1124
  %v1126 = vrcp.pop %v894
  %v1127 = vmul.f32 %v894, %v1126
  %v1128 = vsub.f32 1.0, %v1127
  %v1129 = vmul.f32 %v1126, %v1128
  %v1130 = vadd.f32 %v1126, %v1129
  %vm1131 = vweird.f32 %v894
  %vm1132 = vweird.f32 %v1126
  %vm1133 = vmor %vm1131, %vm1132
  %v1134 = vsel %vm1133, %v1126, %v1130
  %v1135 = vand.u32 2147483647, %v894
  %vm1136 = vcmp.eq.f32.partialorder %v1135, 8.507059e+37
  %v1137 = vand.u32 %v894, 2147483648
  %v1138 = vor.u32 1.1754944e-38, %v1137
  %v1139 = vsel %vm1136, %v1138, %v1134
  %v1140 = vmul.f32 %v830, %v1139
  %v1141 = vrcp.pop %v896
  %v1142 = vmul.f32 %v896, %v1141
  %v1143 = vsub.f32 1.0, %v1142
  %v1144 = vmul.f32 %v1141, %v1143
  %v1145 = vadd.f32 %v1141, %v1144
  %vm1146 = vweird.f32 %v896
  %vm1147 = vweird.f32 %v1141
  %vm1148 = vmor %vm1146, %vm1147
  %v1149 = vsel %vm1148, %v1141, %v1145
  %v1150 = vand.u32 2147483647, %v896
  %vm1151 = vcmp.eq.f32.partialorder %v1150, 8.507059e+37
  %v1152 = vand.u32 %v896, 2147483648
  %v1153 = vor.u32 1.1754944e-38, %v1152
  %v1154 = vsel %vm1151, %v1153, %v1149
  %v1155 = vmul.f32 %v832, %v1154
  %v1156 = vrcp.pop %v898
  %v1157 = vmul.f32 %v898, %v1156
  %v1158 = vsub.f32 1.0, %v1157
  %v1159 = vmul.f32 %v1156, %v1158
  %v1160 = vadd.f32 %v1156, %v1159
  %vm1161 = vweird.f32 %v898
  %vm1162 = vweird.f32 %v1156
  %vm1163 = vmor %vm1161, %vm1162
  %v1164 = vsel %vm1163, %v1156, %v1160
  %v1165 = vand.u32 2147483647, %v898
  %vm1166 = vcmp.eq.f32.partialorder %v1165, 8.507059e+37
  %v1167 = vand.u32 %v898, 2147483648
  %v1168 = vor.u32 1.1754944e-38, %v1167
  %v1169 = vsel %vm1166, %v1168, %v1164
  %v1170 = vmul.f32 %v834, %v1169
  %v1171 = vrcp.pop %v900
  %v1172 = vmul.f32 %v900, %v1171
  %v1173 = vsub.f32 1.0, %v1172
  %v1174 = vmul.f32 %v1171, %v1173
  %v1175 = vadd.f32 %v1171, %v1174
  %vm1176 = vweird.f32 %v900
  %vm1177 = vweird.f32 %v1171
  %vm1178 = vmor %vm1176, %vm1177
  %v1179 = vsel %vm1178, %v1171, %v1175
  %v1180 = vand.u32 2147483647, %v900
  %vm1181 = vcmp.eq.f32.partialorder %v1180, 8.507059e+37
  %v1182 = vand.u32 %v900, 2147483648
  %v1183 = vor.u32 1.1754944e-38, %v1182
  %v1184 = vsel %vm1181, %v1183, %v1179
  %v1185 = vmul.f32 %v836, %v1184
  %v1186 = vrcp.pop %v902
  %v1187 = vmul.f32 %v902, %v1186
  %v1188 = vsub.f32 1.0, %v1187
  %v1189 = vmul.f32 %v1186, %v1188
  %v1190 = vadd.f32 %v1186, %v1189
  %vm1191 = vweird.f32 %v902
  %vm1192 = vweird.f32 %v1186
  %vm1193 = vmor %vm1191, %vm1192
  %v1194 = vsel %vm1193, %v1186, %v1190
  %v1195 = vand.u32 2147483647, %v902
  %vm1196 = vcmp.eq.f32.partialorder %v1195, 8.507059e+37
  %v1197 = vand.u32 %v902, 2147483648
  %v1198 = vor.u32 1.1754944e-38, %v1197
  %v1199 = vsel %vm1196, %v1198, %v1194
  %v1200 = vmul.f32 %v838, %v1199
  %v1201 = vrcp.pop %v904
  %v1202 = vmul.f32 %v904, %v1201
  %v1203 = vsub.f32 1.0, %v1202
  %v1204 = vmul.f32 %v1201, %v1203
  %v1205 = vadd.f32 %v1201, %v1204
  %vm1206 = vweird.f32 %v904
  %vm1207 = vweird.f32 %v1201
  %vm1208 = vmor %vm1206, %vm1207
  %v1209 = vsel %vm1208, %v1201, %v1205
  %v1210 = vand.u32 2147483647, %v904
  %vm1211 = vcmp.eq.f32.partialorder %v1210, 8.507059e+37
  %v1212 = vand.u32 %v904, 2147483648
  %v1213 = vor.u32 1.1754944e-38, %v1212
  %v1214 = vsel %vm1211, %v1213, %v1209
  %v1215 = vmul.f32 %v840, %v1214
  %v1216 = vrcp.pop %v906
  %v1217 = vmul.f32 %v906, %v1216
  %v1218 = vsub.f32 1.0, %v1217
  %v1219 = vmul.f32 %v1216, %v1218
  %v1220 = vadd.f32 %v1216, %v1219
  %vm1221 = vweird.f32 %v906
  %vm1222 = vweird.f32 %v1216
  %vm1223 = vmor %vm1221, %vm1222
  %v1224 = vsel %vm1223, %v1216, %v1220
  %v1225 = vand.u32 2147483647, %v906
  %vm1226 = vcmp.eq.f32.partialorder %v1225, 8.507059e+37
  %v1227 = vand.u32 %v906, 2147483648
  %v1228 = vor.u32 1.1754944e-38, %v1227
  %v1229 = vsel %vm1226, %v1228, %v1224
  %v1230 = vmul.f32 %v842, %v1229
  %v1231 = vrcp.pop %v908
  %v1232 = vmul.f32 %v908, %v1231
  %v1233 = vsub.f32 1.0, %v1232
  %v1234 = vmul.f32 %v1231, %v1233
  %v1235 = vadd.f32 %v1231, %v1234
  %vm1236 = vweird.f32 %v908
  %vm1237 = vweird.f32 %v1231
  %vm1238 = vmor %vm1236, %vm1237
  %v1239 = vsel %vm1238, %v1231, %v1235
  %v1240 = vand.u32 2147483647, %v908
  %vm1241 = vcmp.eq.f32.partialorder %v1240, 8.507059e+37
  %v1242 = vand.u32 %v908, 2147483648
  %v1243 = vor.u32 1.1754944e-38, %v1242
  %v1244 = vsel %vm1241, %v1243, %v1239
  %v1245 = vmul.f32 %v844, %v1244
  %v1246 = vrcp.pop %v910
  %v1247 = vmul.f32 %v910, %v1246
  %v1248 = vsub.f32 1.0, %v1247
  %v1249 = vmul.f32 %v1246, %v1248
  %v1250 = vadd.f32 %v1246, %v1249
  %vm1251 = vweird.f32 %v910
  %vm1252 = vweird.f32 %v1246
  %vm1253 = vmor %vm1251, %vm1252
  %v1254 = vsel %vm1253, %v1246, %v1250
  %v1255 = vand.u32 2147483647, %v910
  %vm1256 = vcmp.eq.f32.partialorder %v1255, 8.507059e+37
  %v1257 = vand.u32 %v910, 2147483648
  %v1258 = vor.u32 1.1754944e-38, %v1257
  %v1259 = vsel %vm1256, %v1258, %v1254
  %v1260 = vmul.f32 %v846, %v1259
  %v1261 = vrcp.pop %v912
  %v1262 = vmul.f32 %v912, %v1261
  %v1263 = vsub.f32 1.0, %v1262
  %v1264 = vmul.f32 %v1261, %v1263
  %v1265 = vadd.f32 %v1261, %v1264
  %vm1266 = vweird.f32 %v912
  %vm1267 = vweird.f32 %v1261
  %vm1268 = vmor %vm1266, %vm1267
  %v1269 = vsel %vm1268, %v1261, %v1265
  %v1270 = vand.u32 2147483647, %v912
  %vm1271 = vcmp.eq.f32.partialorder %v1270, 8.507059e+37
  %v1272 = vand.u32 %v912, 2147483648
  %v1273 = vor.u32 1.1754944e-38, %v1272
  %v1274 = vsel %vm1271, %v1273, %v1269
  %v1275 = vmul.f32 %v848, %v1274
  %v1276 = vrcp.pop %v914
  %v1277 = vmul.f32 %v914, %v1276
  %v1278 = vsub.f32 1.0, %v1277
  %v1279 = vmul.f32 %v1276, %v1278
  %v1280 = vadd.f32 %v1276, %v1279
  %vm1281 = vweird.f32 %v914
  %vm1282 = vweird.f32 %v1276
  %vm1283 = vmor %vm1281, %vm1282
  %v1284 = vsel %vm1283, %v1276, %v1280
  %v1285 = vand.u32 2147483647, %v914
  %vm1286 = vcmp.eq.f32.partialorder %v1285, 8.507059e+37
  %v1287 = vand.u32 %v914, 2147483648
  %v1288 = vor.u32 1.1754944e-38, %v1287
  %v1289 = vsel %vm1286, %v1288, %v1284
  %v1290 = vmul.f32 %v850, %v1289
  %v1291 = vrcp.pop %v916
  %v1292 = vmul.f32 %v916, %v1291
  %v1293 = vsub.f32 1.0, %v1292
  %v1294 = vmul.f32 %v1291, %v1293
  %v1295 = vadd.f32 %v1291, %v1294
  %vm1296 = vweird.f32 %v916
  %vm1297 = vweird.f32 %v1291
  %vm1298 = vmor %vm1296, %vm1297
  %v1299 = vsel %vm1298, %v1291, %v1295
  %v1300 = vand.u32 2147483647, %v916
  %vm1301 = vcmp.eq.f32.partialorder %v1300, 8.507059e+37
  %v1302 = vand.u32 %v916, 2147483648
  %v1303 = vor.u32 1.1754944e-38, %v1302
  %v1304 = vsel %vm1301, %v1303, %v1299
  %v1305 = vmul.f32 %v852, %v1304
  %v1306 = vrcp.pop %v918
  %v1307 = vmul.f32 %v918, %v1306
  %v1308 = vsub.f32 1.0, %v1307
  %v1309 = vmul.f32 %v1306, %v1308
  %v1310 = vadd.f32 %v1306, %v1309
  %vm1311 = vweird.f32 %v918
  %vm1312 = vweird.f32 %v1306
  %vm1313 = vmor %vm1311, %vm1312
  %v1314 = vsel %vm1313, %v1306, %v1310
  %v1315 = vand.u32 2147483647, %v918
  %vm1316 = vcmp.eq.f32.partialorder %v1315, 8.507059e+37
  %v1317 = vand.u32 %v918, 2147483648
  %v1318 = vor.u32 1.1754944e-38, %v1317
  %v1319 = vsel %vm1316, %v1318, %v1314
  %v1320 = vmul.f32 %v854, %v1319
  %v1321 = vrcp.pop %v920
  %v1322 = vmul.f32 %v920, %v1321
  %v1323 = vsub.f32 1.0, %v1322
  %v1324 = vmul.f32 %v1321, %v1323
  %v1325 = vadd.f32 %v1321, %v1324
  %vm1326 = vweird.f32 %v920
  %vm1327 = vweird.f32 %v1321
  %vm1328 = vmor %vm1326, %vm1327
  %v1329 = vsel %vm1328, %v1321, %v1325
  %v1330 = vand.u32 2147483647, %v920
  %vm1331 = vcmp.eq.f32.partialorder %v1330, 8.507059e+37
  %v1332 = vand.u32 %v920, 2147483648
  %v1333 = vor.u32 1.1754944e-38, %v1332
  %v1334 = vsel %vm1331, %v1333, %v1329
  %v1335 = vmul.f32 %v856, %v1334
  %v1336 = vrcp.pop %v922
  %v1337 = vmul.f32 %v922, %v1336
  %v1338 = vsub.f32 1.0, %v1337
  %v1339 = vmul.f32 %v1336, %v1338
  %v1340 = vadd.f32 %v1336, %v1339
  %vm1341 = vweird.f32 %v922
  %vm1342 = vweird.f32 %v1336
  %vm1343 = vmor %vm1341, %vm1342
  %v1344 = vsel %vm1343, %v1336, %v1340
  %v1345 = vand.u32 2147483647, %v922
  %vm1346 = vcmp.eq.f32.partialorder %v1345, 8.507059e+37
  %v1347 = vand.u32 %v922, 2147483648
  %v1348 = vor.u32 1.1754944e-38, %v1347
  %v1349 = vsel %vm1346, %v1348, %v1344
  %v1350 = vmul.f32 %v858, %v1349
  %v1351 = vrcp.pop %v924
  %v1352 = vmul.f32 %v924, %v1351
  %v1353 = vsub.f32 1.0, %v1352
  %v1354 = vmul.f32 %v1351, %v1353
  %v1355 = vadd.f32 %v1351, %v1354
  %vm1356 = vweird.f32 %v924
  %vm1357 = vweird.f32 %v1351
  %vm1358 = vmor %vm1356, %vm1357
  %v1359 = vsel %vm1358, %v1351, %v1355
  %v1360 = vand.u32 2147483647, %v924
  %vm1361 = vcmp.eq.f32.partialorder %v1360, 8.507059e+37
  %v1362 = vand.u32 %v924, 2147483648
  %v1363 = vor.u32 1.1754944e-38, %v1362
  %v1364 = vsel %vm1361, %v1363, %v1359
  %v1365 = vmul.f32 %v860, %v1364
  %v1366 = vrcp.pop %v926
  %v1367 = vmul.f32 %v926, %v1366
  %v1368 = vsub.f32 1.0, %v1367
  %v1369 = vmul.f32 %v1366, %v1368
  %v1370 = vadd.f32 %v1366, %v1369
  %vm1371 = vweird.f32 %v926
  %vm1372 = vweird.f32 %v1366
  %vm1373 = vmor %vm1371, %vm1372
  %v1374 = vsel %vm1373, %v1366, %v1370
  %v1375 = vand.u32 2147483647, %v926
  %vm1376 = vcmp.eq.f32.partialorder %v1375, 8.507059e+37
  %v1377 = vand.u32 %v926, 2147483648
  %v1378 = vor.u32 1.1754944e-38, %v1377
  %v1379 = vsel %vm1376, %v1378, %v1374
  %v1380 = vmul.f32 %v862, %v1379
  %v1381 = vrcp.pop %v928
  %v1382 = vmul.f32 %v928, %v1381
  %v1383 = vsub.f32 1.0, %v1382
  %v1384 = vmul.f32 %v1381, %v1383
  %v1385 = vadd.f32 %v1381, %v1384
  %vm1386 = vweird.f32 %v928
  %vm1387 = vweird.f32 %v1381
  %vm1388 = vmor %vm1386, %vm1387
  %v1389 = vsel %vm1388, %v1381, %v1385
  %v1390 = vand.u32 2147483647, %v928
  %vm1391 = vcmp.eq.f32.partialorder %v1390, 8.507059e+37
  %v1392 = vand.u32 %v928, 2147483648
  %v1393 = vor.u32 1.1754944e-38, %v1392
  %v1394 = vsel %vm1391, %v1393, %v1389
  %v1395 = vmul.f32 %v864, %v1394
  %v1396 = vrcp.pop %v930
  %v1397 = vmul.f32 %v930, %v1396
  %v1398 = vsub.f32 1.0, %v1397
  %v1399 = vmul.f32 %v1396, %v1398
  %v1400 = vadd.f32 %v1396, %v1399
  %vm1401 = vweird.f32 %v930
  %vm1402 = vweird.f32 %v1396
  %vm1403 = vmor %vm1401, %vm1402
  %v1404 = vsel %vm1403, %v1396, %v1400
  %v1405 = vand.u32 2147483647, %v930
  %vm1406 = vcmp.eq.f32.partialorder %v1405, 8.507059e+37
  %v1407 = vand.u32 %v930, 2147483648
  %v1408 = vor.u32 1.1754944e-38, %v1407
  %v1409 = vsel %vm1406, %v1408, %v1404
  %v1410 = vmul.f32 %v866, %v1409
  %1411 = vst [vmem:[%s7] sm:$0xff] %v945
  %1412 = vst [vmem:[%s7 + $0x8] sm:$0xff] %v960
  %1413 = vst [vmem:[%s7 + $0x10] sm:$0xff] %v975
  %1414 = vst [vmem:[%s7 + $0x18] sm:$0xff] %v990
  %1415 = vst [vmem:[%s7 + $0x20] sm:$0xff] %v1005
  %1416 = vst [vmem:[%s7 + $0x28] sm:$0xff] %v1020
  %1417 = vst [vmem:[%s7 + $0x30] sm:$0xff] %v1035
  %1418 = vst [vmem:[%s7 + $0x38] sm:$0xff] %v1050
  %1419 = vst [vmem:[%s7 + $0x40] sm:$0xff] %v1065
  %1420 = vst [vmem:[%s7 + $0x48] sm:$0xff] %v1080
  %1421 = vst [vmem:[%s7 + $0x50] sm:$0xff] %v1095
  %1422 = vst [vmem:[%s7 + $0x58] sm:$0xff] %v1110
  %1423 = vst [vmem:[%s7 + $0x60] sm:$0xff] %v1125
  %1424 = vst [vmem:[%s7 + $0x68] sm:$0xff] %v1140
  %1425 = vst [vmem:[%s7 + $0x70] sm:$0xff] %v1155
  %1426 = vst [vmem:[%s7 + $0x78] sm:$0xff] %v1170
  %1427 = vst [vmem:[%s7 + $0x80] sm:$0xff] %v1185
  %1428 = vst [vmem:[%s7 + $0x88] sm:$0xff] %v1200
  %1429 = vst [vmem:[%s7 + $0x90] sm:$0xff] %v1215
  %1430 = vst [vmem:[%s7 + $0x98] sm:$0xff] %v1230
  %1431 = vst [vmem:[%s7 + $0xa0] sm:$0xff] %v1245
  %1432 = vst [vmem:[%s7 + $0xa8] sm:$0xff] %v1260
  %1433 = vst [vmem:[%s7 + $0xb0] sm:$0xff] %v1275
  %1434 = vst [vmem:[%s7 + $0xb8] sm:$0xff] %v1290
  %1435 = vst [vmem:[%s7 + $0xc0] sm:$0xff] %v1305
  %1436 = vst [vmem:[%s7 + $0xc8] sm:$0xff] %v1320
  %1437 = vst [vmem:[%s7 + $0xd0] sm:$0xff] %v1335
  %1438 = vst [vmem:[%s7 + $0xd8] sm:$0xff] %v1350
  %1439 = vst [vmem:[%s7 + $0xe0] sm:$0xff] %v1365
  %1440 = vst [vmem:[%s7 + $0xe8] sm:$0xff] %v1380
  %1441 = vst [vmem:[%s7 + $0xf0] sm:$0xff] %v1395
  %1442 = vst [vmem:[%s7 + $0xf8] sm:$0xff] %v1410
  // Predicated region
  $region30: #{_lambda_.1} parent=0 // pred_check
    _
  $region31: #{_lambda_.1} parent=0 // pred_check_branch
    %1444 = sbr.rel (0) target = $region33
  $region32: #{_lambda_.1} parent=0 // pred_region
    _
  $region33: #{_lambda_.1} parent=0 // pred_fallthru
    _
  // Predicated region
  $region34: #{_lambda_.1} parent=0 // pred_check
    _
  $region35: #{_lambda_.1} parent=0 // pred_check_branch
    %1446 = sbr.rel (0) target = $region37
  $region36: #{_lambda_.1} parent=0 // pred_region
    _
  $region37: #{_lambda_.1} parent=0 // pred_fallthru
    _

</llo_original>
